<compile_context>
chip_gen: v5e
topology: v5e:2x2
jax: 0.10.0
libtpu: 0.0.40
codegen_flags: <defaults>
</compile_context>

<pallas_src>
import jax
import jax.numpy as jnp
from jax.experimental import pallas as pl
from jax.experimental.pallas import tpu as pltpu

VMEM = pl.BlockSpec(memory_space=pltpu.MemorySpace.VMEM)
BN_EPS = 1e-5
LANE = 128


def _round_up(n, m):
    return (n + m - 1) // m * m


# ----------------------------- fused kernel ---------------------------------
def _make_fused_kernel(num_stage):
    """One fused kernel: relu(xW1'+c1) -> num_stage residual blocks -> head."""
    def kernel(*refs):
        x_ref = refs[0]
        w1_ref, c1_ref = refs[1], refs[2]
        stage_refs = refs[3:3 + 4 * num_stage]
        wh_ref, ch_ref = refs[3 + 4 * num_stage], refs[4 + 4 * num_stage]
        o_ref = refs[5 + 4 * num_stage]

        # Input projection (BN + bias folded into W1', c1).
        y = jnp.maximum(
            jnp.dot(x_ref[...], w1_ref[...], preferred_element_type=jnp.float32)
            + c1_ref[...], 0.0)

        # Residual stages: y = y + relu(relu(y@Wa'+ca)@Wb'+cb)
        for s in range(num_stage):
            wa, ca, wb, cb = stage_refs[4 * s: 4 * s + 4]
            t = jnp.maximum(
                jnp.dot(y, wa[...], preferred_element_type=jnp.float32) + ca[...],
                0.0)
            t = jnp.maximum(
                jnp.dot(t, wb[...], preferred_element_type=jnp.float32) + cb[...],
                0.0)
            y = y + t

        # Fused head: columns [0:num_3d] = out*mult, column [num_3d] = scale logit.
        o_ref[...] = (
            jnp.dot(y, wh_ref[...], preferred_element_type=jnp.float32) + ch_ref[...])
    return kernel


# ------------------------- parameter construction ---------------------------
def _init_linear(key, fan_in, fan_out):
    kw, kb = jax.random.split(key)
    w = jax.random.normal(kw, (fan_in, fan_out), jnp.float32) * 0.05
    b = jax.random.normal(kb, (fan_out,), jnp.float32) * 0.01
    return w, b


def _bn_params(n):
    # Fresh BatchNorm1d: gamma=1, beta=0, running_mean=0, running_var=1.
    return dict(gamma=jnp.ones((n,), jnp.float32),
                beta=jnp.zeros((n,), jnp.float32),
                mean=jnp.zeros((n,), jnp.float32),
                var=jnp.ones((n,), jnp.float32))


def init_params(key, num_2d, num_3d, linear_size, num_stage, unnorm_init):
    keys = jax.random.split(key, 3 + 2 * num_stage)
    params = {}
    params["w1"], params["b1"] = _init_linear(keys[0], num_2d, linear_size)
    params["bn1"] = _bn_params(linear_size)
    stages = []
    for l in range(num_stage):
        wa, ba = _init_linear(keys[1 + 2 * l], linear_size, linear_size)
        wb, bb = _init_linear(keys[2 + 2 * l], linear_size, linear_size)
        stages.append((wa, ba, _bn_params(linear_size),
                       wb, bb, _bn_params(linear_size)))
    params["stages"] = stages
    params["w2"], params["b2"] = _init_linear(keys[1 + 2 * num_stage],
                                              linear_size, num_3d)
    params["ws"], params["bs"] = _init_linear(keys[2 + 2 * num_stage],
                                              linear_size, 1)
    params["mult"] = jnp.ones((num_3d,), jnp.float32) * unnorm_init
    return params


def _fold_bn(w, b, bn):
    # (xW+b)*s + sh  ==  x(W*s) + (b*s + sh)
    s = bn["gamma"] * jax.lax.rsqrt(bn["var"] + BN_EPS)
    return w * s[None, :], b * s + bn["beta"] - bn["mean"] * s


def _pad2(w, rows, cols):
    return jnp.zeros((rows, cols), w.dtype).at[:w.shape[0], :w.shape[1]].set(w)


def _pad_row(b, cols):
    return jnp.zeros((1, cols), b.dtype).at[0, :b.shape[0]].set(b)


def build_kernel_params(params, *, num_2d, num_3d, linear_size, unnorm_op):
    """Fold BN/bias/mult and zero-pad everything to 128-lane shapes."""
    in_pad = _round_up(num_2d, LANE)
    h_pad = _round_up(linear_size, LANE)
    head_pad = _round_up(num_3d + 1, LANE)

    flat = []
    w1, c1 = _fold_bn(params["w1"], params["b1"], params["bn1"])
    flat += [_pad2(w1, in_pad, h_pad), _pad_row(c1, h_pad)]
    for (wa, ba, bna, wb, bb, bnb) in params["stages"]:
        wa_f, ca = _fold_bn(wa, ba, bna)
        wb_f, cb = _fold_bn(wb, bb, bnb)
        flat += [_pad2(wa_f, h_pad, h_pad), _pad_row(ca, h_pad),
                 _pad2(wb_f, h_pad, h_pad), _pad_row(cb, h_pad)]
    # Head: fold `mult` into w2/b2 (static branch on unnorm_op), concat ws.
    mult = params["mult"] if unnorm_op else jnp.ones_like(params["mult"])
    wh = jnp.concatenate([params["w2"] * mult[None, :], params["ws"]], axis=1)
    ch = jnp.concatenate([params["b2"] * mult, params["bs"]], axis=0)
    flat += [_pad2(wh, h_pad, head_pad), _pad_row(ch, head_pad)]
    return flat, in_pad, head_pad


# ------------------------------ forward -------------------------------------
def linear_model_forward(x, params, *, num_3d, linear_size, num_stage,
                         scale_range, unnorm_op):
    B, num_2d = x.shape
    flat, in_pad, head_pad = build_kernel_params(
        params, num_2d=num_2d, num_3d=num_3d, linear_size=linear_size,
        unnorm_op=unnorm_op)
    x_pad = jnp.zeros((B, in_pad), jnp.float32).at[:, :num_2d].set(x)

    o = pl.pallas_call(
        _make_fused_kernel(num_stage),
        out_shape=jax.ShapeDtypeStruct((B, head_pad), jnp.float32),
        in_specs=[VMEM] * (1 + len(flat)),
        out_specs=VMEM,
    )(x_pad, *flat)

    out = o[:, :num_3d]
    scale = scale_range * jax.nn.sigmoid(o[:, num_3d:num_3d + 1])
    return out, scale


# --------------------------- pure-JAX reference ------------------------------
def reference_forward(x, params, *, scale_range, unnorm_op):
    def bn(y, p):
        return (y - p["mean"]) * (p["gamma"] * jax.lax.rsqrt(p["var"] + BN_EPS)) \
            + p["beta"]
    y = jnp.maximum(bn(x @ params["w1"] + params["b1"], params["bn1"]), 0.0)
    for (wa, ba, bna, wb, bb, bnb) in params["stages"]:
        t = jnp.maximum(bn(y @ wa + ba, bna), 0.0)
        t = jnp.maximum(bn(t @ wb + bb, bnb), 0.0)
        y = y + t
    out = y @ params["w2"] + params["b2"]
    if unnorm_op:
        out = out * params["mult"]
    scale = scale_range * jax.nn.sigmoid(y @ params["ws"] + params["bs"])
    return out, scale


# -------------------------------- main ---------------------------------------
if __name__ == "__main__":
    # Module hyper-parameters (small, consistent with the forward pass).
    num_2d_coords = 32      # input_size
    num_3d_coords = 48      # output_size
    linear_size = 64
    num_stage = 2
    p_dropout = 0.5         # identity in inference mode
    predict_scale = True
    scale_range = 1.5
    unnorm_op = True
    unnorm_init = 1.0
    batch = 8

    key = jax.random.PRNGKey(0)
    kx, kp = jax.random.split(key)
    x = jax.random.normal(kx, (batch, num_2d_coords), jnp.float32)
    params = init_params(kp, num_2d_coords, num_3d_coords, linear_size,
                         num_stage, unnorm_init)

    out, scale = linear_model_forward(x, params,
                                      num_3d=num_3d_coords,
                                      linear_size=linear_size,
                                      num_stage=num_stage,
                                      scale_range=scale_range,
                                      unnorm_op=unnorm_op)
    jax.block_until_ready((out, scale))
    assert out.shape == (batch, num_3d_coords)
    assert scale.shape == (batch, 1)

    # Numerical sanity check against an unfolded pure-JAX reference.
    ref_out, ref_scale = reference_forward(x, params,
                                           scale_range=scale_range,
                                           unnorm_op=unnorm_op)
    assert jnp.allclose(out, ref_out, rtol=1e-3, atol=1e-3)
    assert jnp.allclose(scale, ref_scale, rtol=1e-3, atol=1e-3)

    print("KERNEL_OK")
</pallas_src>

<mosaic_0001>
module attributes {stable_mosaic.version = 11 : i64} {
  func.func @kernel(%arg0: memref<8x128xf32, #tpu.memory_space<vmem>>, %arg1: memref<128x128xf32, #tpu.memory_space<vmem>>, %arg2: memref<1x128xf32, #tpu.memory_space<vmem>>, %arg3: memref<128x128xf32, #tpu.memory_space<vmem>>, %arg4: memref<1x128xf32, #tpu.memory_space<vmem>>, %arg5: memref<128x128xf32, #tpu.memory_space<vmem>>, %arg6: memref<1x128xf32, #tpu.memory_space<vmem>>, %arg7: memref<128x128xf32, #tpu.memory_space<vmem>>, %arg8: memref<1x128xf32, #tpu.memory_space<vmem>>, %arg9: memref<128x128xf32, #tpu.memory_space<vmem>>, %arg10: memref<1x128xf32, #tpu.memory_space<vmem>>, %arg11: memref<128x128xf32, #tpu.memory_space<vmem>>, %arg12: memref<1x128xf32, #tpu.memory_space<vmem>>, %arg13: memref<8x128xf32, #tpu.memory_space<vmem>>) attributes {dimension_semantics = [], scalar_prefetch = 0 : i64, scratch_operands = 0 : i64, tpu.core_type = #tpu.core_type<tc>} {
    %c0 = arith.constant 0 : index
    %c0_0 = arith.constant 0 : index
    %0 = vector.load %arg0[%c0, %c0_0] : memref<8x128xf32, #tpu.memory_space<vmem>>, vector<8x128xf32>
    %c0_1 = arith.constant 0 : index
    %c0_2 = arith.constant 0 : index
    %1 = vector.load %arg1[%c0_1, %c0_2] : memref<128x128xf32, #tpu.memory_space<vmem>>, vector<128x128xf32>
    %cst = arith.constant dense<0.000000e+00> : vector<8x128xf32>
    %2 = tpu.matmul %0, %1, %cst {dimension_numbers = #tpu.dot_dimension_numbers<[1], [0], [0], [1], [0, 0, 1, 1], [], []>} : vector<8x128xf32>, vector<128x128xf32>, vector<8x128xf32> -> vector<8x128xf32>
    %c0_3 = arith.constant 0 : index
    %c0_4 = arith.constant 0 : index
    %3 = vector.load %arg2[%c0_3, %c0_4] : memref<1x128xf32, #tpu.memory_space<vmem>>, vector<1x128xf32>
    %4 = vector.broadcast %3 : vector<1x128xf32> to vector<8x128xf32>
    %5 = arith.addf %2, %4 : vector<8x128xf32>
    %cst_5 = arith.constant 0.000000e+00 : f32
    %6 = vector.broadcast %cst_5 : f32 to vector<8x128xf32>
    %7 = arith.maximumf %5, %6 : vector<8x128xf32>
    %c0_6 = arith.constant 0 : index
    %c0_7 = arith.constant 0 : index
    %8 = vector.load %arg3[%c0_6, %c0_7] : memref<128x128xf32, #tpu.memory_space<vmem>>, vector<128x128xf32>
    %cst_8 = arith.constant dense<0.000000e+00> : vector<8x128xf32>
    %9 = tpu.matmul %7, %8, %cst_8 {dimension_numbers = #tpu.dot_dimension_numbers<[1], [0], [0], [1], [0, 0, 1, 1], [], []>} : vector<8x128xf32>, vector<128x128xf32>, vector<8x128xf32> -> vector<8x128xf32>
    %c0_9 = arith.constant 0 : index
    %c0_10 = arith.constant 0 : index
    %10 = vector.load %arg4[%c0_9, %c0_10] : memref<1x128xf32, #tpu.memory_space<vmem>>, vector<1x128xf32>
    %11 = vector.broadcast %10 : vector<1x128xf32> to vector<8x128xf32>
    %12 = arith.addf %9, %11 : vector<8x128xf32>
    %cst_11 = arith.constant 0.000000e+00 : f32
    %13 = vector.broadcast %cst_11 : f32 to vector<8x128xf32>
    %14 = arith.maximumf %12, %13 : vector<8x128xf32>
    %c0_12 = arith.constant 0 : index
    %c0_13 = arith.constant 0 : index
    %15 = vector.load %arg5[%c0_12, %c0_13] : memref<128x128xf32, #tpu.memory_space<vmem>>, vector<128x128xf32>
    %cst_14 = arith.constant dense<0.000000e+00> : vector<8x128xf32>
    %16 = tpu.matmul %14, %15, %cst_14 {dimension_numbers = #tpu.dot_dimension_numbers<[1], [0], [0], [1], [0, 0, 1, 1], [], []>} : vector<8x128xf32>, vector<128x128xf32>, vector<8x128xf32> -> vector<8x128xf32>
    %c0_15 = arith.constant 0 : index
    %c0_16 = arith.constant 0 : index
    %17 = vector.load %arg6[%c0_15, %c0_16] : memref<1x128xf32, #tpu.memory_space<vmem>>, vector<1x128xf32>
    %18 = vector.broadcast %17 : vector<1x128xf32> to vector<8x128xf32>
    %19 = arith.addf %16, %18 : vector<8x128xf32>
    %cst_17 = arith.constant 0.000000e+00 : f32
    %20 = vector.broadcast %cst_17 : f32 to vector<8x128xf32>
    %21 = arith.maximumf %19, %20 : vector<8x128xf32>
    %22 = arith.addf %7, %21 : vector<8x128xf32>
    %c0_18 = arith.constant 0 : index
    %c0_19 = arith.constant 0 : index
    %23 = vector.load %arg7[%c0_18, %c0_19] : memref<128x128xf32, #tpu.memory_space<vmem>>, vector<128x128xf32>
    %cst_20 = arith.constant dense<0.000000e+00> : vector<8x128xf32>
    %24 = tpu.matmul %22, %23, %cst_20 {dimension_numbers = #tpu.dot_dimension_numbers<[1], [0], [0], [1], [0, 0, 1, 1], [], []>} : vector<8x128xf32>, vector<128x128xf32>, vector<8x128xf32> -> vector<8x128xf32>
    %c0_21 = arith.constant 0 : index
    %c0_22 = arith.constant 0 : index
    %25 = vector.load %arg8[%c0_21, %c0_22] : memref<1x128xf32, #tpu.memory_space<vmem>>, vector<1x128xf32>
    %26 = vector.broadcast %25 : vector<1x128xf32> to vector<8x128xf32>
    %27 = arith.addf %24, %26 : vector<8x128xf32>
    %cst_23 = arith.constant 0.000000e+00 : f32
    %28 = vector.broadcast %cst_23 : f32 to vector<8x128xf32>
    %29 = arith.maximumf %27, %28 : vector<8x128xf32>
    %c0_24 = arith.constant 0 : index
    %c0_25 = arith.constant 0 : index
    %30 = vector.load %arg9[%c0_24, %c0_25] : memref<128x128xf32, #tpu.memory_space<vmem>>, vector<128x128xf32>
    %cst_26 = arith.constant dense<0.000000e+00> : vector<8x128xf32>
    %31 = tpu.matmul %29, %30, %cst_26 {dimension_numbers = #tpu.dot_dimension_numbers<[1], [0], [0], [1], [0, 0, 1, 1], [], []>} : vector<8x128xf32>, vector<128x128xf32>, vector<8x128xf32> -> vector<8x128xf32>
    %c0_27 = arith.constant 0 : index
    %c0_28 = arith.constant 0 : index
    %32 = vector.load %arg10[%c0_27, %c0_28] : memref<1x128xf32, #tpu.memory_space<vmem>>, vector<1x128xf32>
    %33 = vector.broadcast %32 : vector<1x128xf32> to vector<8x128xf32>
    %34 = arith.addf %31, %33 : vector<8x128xf32>
    %cst_29 = arith.constant 0.000000e+00 : f32
    %35 = vector.broadcast %cst_29 : f32 to vector<8x128xf32>
    %36 = arith.maximumf %34, %35 : vector<8x128xf32>
    %37 = arith.addf %22, %36 : vector<8x128xf32>
    %c0_30 = arith.constant 0 : index
    %c0_31 = arith.constant 0 : index
    %38 = vector.load %arg11[%c0_30, %c0_31] : memref<128x128xf32, #tpu.memory_space<vmem>>, vector<128x128xf32>
    %cst_32 = arith.constant dense<0.000000e+00> : vector<8x128xf32>
    %39 = tpu.matmul %37, %38, %cst_32 {dimension_numbers = #tpu.dot_dimension_numbers<[1], [0], [0], [1], [0, 0, 1, 1], [], []>} : vector<8x128xf32>, vector<128x128xf32>, vector<8x128xf32> -> vector<8x128xf32>
    %c0_33 = arith.constant 0 : index
    %c0_34 = arith.constant 0 : index
    %40 = vector.load %arg12[%c0_33, %c0_34] : memref<1x128xf32, #tpu.memory_space<vmem>>, vector<1x128xf32>
    %41 = vector.broadcast %40 : vector<1x128xf32> to vector<8x128xf32>
    %42 = arith.addf %39, %41 : vector<8x128xf32>
    %c0_35 = arith.constant 0 : index
    %c0_36 = arith.constant 0 : index
    %43 = vector.load %arg13[%c0_35, %c0_36] : memref<8x128xf32, #tpu.memory_space<vmem>>, vector<8x128xf32>
    tpu.vector_store %arg13[%c0_35, %c0_36], %42 {strides = array<i32>} : memref<8x128xf32, #tpu.memory_space<vmem>>, vector<8x128xf32>,
    return
  }
}

</mosaic_0001>

<llo_original>
// kernel: tpu_custom_call.1
$region0: #{tpu_custom_call.1}
  #allocation0 [shape = 'u32[]', space=smem, size = 0x4, offset = 0x4, fixed_abs, tag = 'smem constant byte address 0x4 - core index']
  #allocation1 [shape = 'u32[72,128]{1,0:T(1,128)}', space=vmem, size = 0x9000, scoped, tag = 'internal scratch']
  %s0 = inlined_call_operand.hbm [shape: f32[8,128], index: 0, kind: input, shape index: {}]
  %s1 = inlined_call_operand.hbm [shape: f32[128,128], index: 1, kind: input, shape index: {}]
  %s2 = inlined_call_operand.vmem [shape: f32[1,128], index: 2, kind: input, shape index: {}]
  %s3 = inlined_call_operand.hbm [shape: f32[128,128], index: 3, kind: input, shape index: {}]
  %s4 = inlined_call_operand.vmem [shape: f32[1,128], index: 4, kind: input, shape index: {}]
  %s5 = inlined_call_operand.hbm [shape: f32[128,128], index: 5, kind: input, shape index: {}]
  %s6 = inlined_call_operand.vmem [shape: f32[1,128], index: 6, kind: input, shape index: {}]
  %s7 = inlined_call_operand.hbm [shape: f32[128,128], index: 7, kind: input, shape index: {}]
  %s8 = inlined_call_operand.vmem [shape: f32[1,128], index: 8, kind: input, shape index: {}]
  %s9 = inlined_call_operand.hbm [shape: f32[128,128], index: 9, kind: input, shape index: {}]
  %s10 = inlined_call_operand.vmem [shape: f32[1,128], index: 10, kind: input, shape index: {}]
  %s11 = inlined_call_operand.hbm [shape: f32[128,128], index: 11, kind: input, shape index: {}]
  %s12 = inlined_call_operand.vmem [shape: f32[1,128], index: 12, kind: input, shape index: {}]
  %s13 = inlined_call_operand.hbm [shape: f32[8,128], index: 13, kind: output, shape index: {}]
  %s14 = sld [smem:[#allocation0]]
  $region90: #{tpu_custom_call.1} parent=0
    _
  %s16 = ssub.s32 1, %s14
  %s17 = scalar_select 0, %s16, %s14
  $region1: #{tpu_custom_call.1} parent=0
    #allocation2 [shape = 'u8[4096]{0}', space=vmem, size = 0x1000, scoped, tag = 'input window, operand 0, single buffered']
    #allocation3 [shape = 's32[1]{0}', space=sflag, size = 0x4, scoped, tag = 'scoped memory for tpu_custom_call.1']
    #allocation4 [shape = 's32[1]{0}', space=sflag, size = 0x4, scoped, tag = 'scoped memory for tpu_custom_call.1']
    #allocation5 [shape = 'u8[65536]{0}', space=vmem, size = 0x10000, scoped, tag = 'input window, operand 1, single buffered']
    #allocation6 [shape = 's32[1]{0}', space=sflag, size = 0x4, scoped, tag = 'scoped memory for tpu_custom_call.1']
    #allocation7 [shape = 'u8[65536]{0}', space=vmem, size = 0x10000, scoped, tag = 'input window, operand 3, single buffered']
    #allocation8 [shape = 'u8[65536]{0}', space=vmem, size = 0x10000, scoped, tag = 'input window, operand 5, single buffered']
    #allocation9 [shape = 's32[1]{0}', space=sflag, size = 0x4, scoped, tag = 'scoped memory for tpu_custom_call.1']
    #allocation10 [shape = 'u8[65536]{0}', space=vmem, size = 0x10000, scoped, tag = 'input window, operand 7, single buffered']
    #allocation11 [shape = 'u8[65536]{0}', space=vmem, size = 0x10000, scoped, tag = 'input window, operand 9, single buffered']
    #allocation12 [shape = 's32[1]{0}', space=sflag, size = 0x4, scoped, tag = 'scoped memory for tpu_custom_call.1']
    #allocation13 [shape = 'u8[65536]{0}', space=vmem, size = 0x10000, scoped, tag = 'input window, operand 11, single buffered']
    #allocation14 [shape = 'u8[4096]{0}', space=vmem, size = 0x1000, scoped, tag = 'output window, operand 0, single buffered']
    %18 = vsyncpa [#allocation3], 0
    %19 = vsyncpa [#allocation6], 0
    %20 = vsyncpa [#allocation9], 0
    %21 = vsyncpa [#allocation12], 0
    %22 = vsyncpa [#allocation4], 0
    // Predicated region
    $region2: #{tpu_custom_call.1} parent=1 // pred_check
      _
    $region3: #{tpu_custom_call.1} parent=1 // pred_check_branch
      %24 = sbr.rel (0) target = $region5
    $region4: #{tpu_custom_call.1} parent=1 // pred_region
      %26 = vsyncadd [#allocation3], 0
      %s28 = sshll.u32 %s0, 4
      %s29 = int_to_ptr.hbm [resolvable:$true] %s28
      %s30 = sshll.u32 [#allocation2], 4
      %s31 = int_to_ptr.vmem [resolvable:$true] %s30
      %33 = dma.hbm_to_vmem [thread:$0]  %s29, 128, %s31, [#allocation3]
    $region5: #{tpu_custom_call.1} parent=1 // pred_fallthru
      _
    // Predicated region
    $region6: #{tpu_custom_call.1} parent=1 // pred_check
      _
    $region7: #{tpu_custom_call.1} parent=1 // pred_check_branch
      %35 = sbr.rel (0) target = $region9
    $region8: #{tpu_custom_call.1} parent=1 // pred_region
      %37 = vsyncadd [#allocation6], 0
      %s38 = sshll.u32 %s1, 4
      %s39 = int_to_ptr.hbm [resolvable:$true] %s38
      %s40 = sshll.u32 [#allocation5], 4
      %s41 = int_to_ptr.vmem [resolvable:$true] %s40
      %46 = dma.hbm_to_vmem [thread:$0]  %s39, 2048, %s41, [#allocation6], 128, 128, 8
    $region9: #{tpu_custom_call.1} parent=1 // pred_fallthru
      _
    // Predicated region
    $region10: #{tpu_custom_call.1} parent=1 // pred_check
      _
    $region11: #{tpu_custom_call.1} parent=1 // pred_check_branch
      %48 = sbr.rel (0) target = $region13
    $region12: #{tpu_custom_call.1} parent=1 // pred_region
      _
    $region13: #{tpu_custom_call.1} parent=1 // pred_fallthru
      _
    // Predicated region
    $region14: #{tpu_custom_call.1} parent=1 // pred_check
      _
    $region15: #{tpu_custom_call.1} parent=1 // pred_check_branch
      %50 = sbr.rel (0) target = $region17
    $region16: #{tpu_custom_call.1} parent=1 // pred_region
      %52 = vsyncadd [#allocation6], 0
      %s53 = sshll.u32 %s3, 4
      %s54 = int_to_ptr.hbm [resolvable:$true] %s53
      %s55 = sshll.u32 [#allocation7], 4
      %s56 = int_to_ptr.vmem [resolvable:$true] %s55
      %61 = dma.hbm_to_vmem [thread:$0]  %s54, 2048, %s56, [#allocation6], 128, 128, 8
    $region17: #{tpu_custom_call.1} parent=1 // pred_fallthru
      _
    // Predicated region
    $region18: #{tpu_custom_call.1} parent=1 // pred_check
      _
    $region19: #{tpu_custom_call.1} parent=1 // pred_check_branch
      %63 = sbr.rel (0) target = $region21
    $region20: #{tpu_custom_call.1} parent=1 // pred_region
      _
    $region21: #{tpu_custom_call.1} parent=1 // pred_fallthru
      _
    // Predicated region
    $region22: #{tpu_custom_call.1} parent=1 // pred_check
      _
    $region23: #{tpu_custom_call.1} parent=1 // pred_check_branch
      %65 = sbr.rel (0) target = $region25
    $region24: #{tpu_custom_call.1} parent=1 // pred_region
      %67 = vsyncadd [#allocation9], 0
      %s68 = sshll.u32 %s5, 4
      %s69 = int_to_ptr.hbm [resolvable:$true] %s68
      %s70 = sshll.u32 [#allocation8], 4
      %s71 = int_to_ptr.vmem [resolvable:$true] %s70
      %76 = dma.hbm_to_vmem [thread:$0]  %s69, 2048, %s71, [#allocation9], 128, 128, 8
    $region25: #{tpu_custom_call.1} parent=1 // pred_fallthru
      _
    // Predicated region
    $region26: #{tpu_custom_call.1} parent=1 // pred_check
      _
    $region27: #{tpu_custom_call.1} parent=1 // pred_check_branch
      %78 = sbr.rel (0) target = $region29
    $region28: #{tpu_custom_call.1} parent=1 // pred_region
      _
    $region29: #{tpu_custom_call.1} parent=1 // pred_fallthru
      _
    // Predicated region
    $region30: #{tpu_custom_call.1} parent=1 // pred_check
      _
    $region31: #{tpu_custom_call.1} parent=1 // pred_check_branch
      %80 = sbr.rel (0) target = $region33
    $region32: #{tpu_custom_call.1} parent=1 // pred_region
      %82 = vsyncadd [#allocation9], 0
      %s83 = sshll.u32 %s7, 4
      %s84 = int_to_ptr.hbm [resolvable:$true] %s83
      %s85 = sshll.u32 [#allocation10], 4
      %s86 = int_to_ptr.vmem [resolvable:$true] %s85
      %91 = dma.hbm_to_vmem [thread:$0]  %s84, 2048, %s86, [#allocation9], 128, 128, 8
    $region33: #{tpu_custom_call.1} parent=1 // pred_fallthru
      _
    // Predicated region
    $region34: #{tpu_custom_call.1} parent=1 // pred_check
      _
    $region35: #{tpu_custom_call.1} parent=1 // pred_check_branch
      %93 = sbr.rel (0) target = $region37
    $region36: #{tpu_custom_call.1} parent=1 // pred_region
      _
    $region37: #{tpu_custom_call.1} parent=1 // pred_fallthru
      _
    // Predicated region
    $region38: #{tpu_custom_call.1} parent=1 // pred_check
      _
    $region39: #{tpu_custom_call.1} parent=1 // pred_check_branch
      %95 = sbr.rel (0) target = $region41
    $region40: #{tpu_custom_call.1} parent=1 // pred_region
      %97 = vsyncadd [#allocation12], 0
      %s98 = sshll.u32 %s9, 4
      %s99 = int_to_ptr.hbm [resolvable:$true] %s98
      %s100 = sshll.u32 [#allocation11], 4
      %s101 = int_to_ptr.vmem [resolvable:$true] %s100
      %106 = dma.hbm_to_vmem [thread:$0]  %s99, 2048, %s101, [#allocation12], 128, 128, 8
    $region41: #{tpu_custom_call.1} parent=1 // pred_fallthru
      _
    // Predicated region
    $region42: #{tpu_custom_call.1} parent=1 // pred_check
      _
    $region43: #{tpu_custom_call.1} parent=1 // pred_check_branch
      %108 = sbr.rel (0) target = $region45
    $region44: #{tpu_custom_call.1} parent=1 // pred_region
      _
    $region45: #{tpu_custom_call.1} parent=1 // pred_fallthru
      _
    // Predicated region
    $region46: #{tpu_custom_call.1} parent=1 // pred_check
      _
    $region47: #{tpu_custom_call.1} parent=1 // pred_check_branch
      %110 = sbr.rel (0) target = $region49
    $region48: #{tpu_custom_call.1} parent=1 // pred_region
      %112 = vsyncadd [#allocation12], 0
      %s113 = sshll.u32 %s11, 4
      %s114 = int_to_ptr.hbm [resolvable:$true] %s113
      %s115 = sshll.u32 [#allocation13], 4
      %s116 = int_to_ptr.vmem [resolvable:$true] %s115
      %121 = dma.hbm_to_vmem [thread:$0]  %s114, 2048, %s116, [#allocation12], 128, 128, 8
    $region49: #{tpu_custom_call.1} parent=1 // pred_fallthru
      _
    // Predicated region
    $region50: #{tpu_custom_call.1} parent=1 // pred_check
      _
    $region51: #{tpu_custom_call.1} parent=1 // pred_check_branch
      %123 = sbr.rel (0) target = $region53
    $region52: #{tpu_custom_call.1} parent=1 // pred_region
      _
    $region53: #{tpu_custom_call.1} parent=1 // pred_fallthru
      _
    // Predicated region
    $region54: #{tpu_custom_call.1} parent=1 // pred_check
      _
    $region55: #{tpu_custom_call.1} parent=1 // pred_check_branch
      %125 = sbr.rel (0) target = $region57
    $region56: #{tpu_custom_call.1} parent=1 // pred_region
      %127 = dma.done [#allocation3], 128
    $region57: #{tpu_custom_call.1} parent=1 // pred_fallthru
      _
    // Predicated region
    $region58: #{tpu_custom_call.1} parent=1 // pred_check
      _
    $region59: #{tpu_custom_call.1} parent=1 // pred_check_branch
      %129 = sbr.rel (0) target = $region61
    $region60: #{tpu_custom_call.1} parent=1 // pred_region
      %131 = dma.done [#allocation6], 2048
    $region61: #{tpu_custom_call.1} parent=1 // pred_fallthru
      _
    // Predicated region
    $region62: #{tpu_custom_call.1} parent=1 // pred_check
      _
    $region63: #{tpu_custom_call.1} parent=1 // pred_check_branch
      %133 = sbr.rel (0) target = $region65
    $region64: #{tpu_custom_call.1} parent=1 // pred_region
      %135 = dma.done [#allocation6], 2048
    $region65: #{tpu_custom_call.1} parent=1 // pred_fallthru
      _
    // Predicated region
    $region66: #{tpu_custom_call.1} parent=1 // pred_check
      _
    $region67: #{tpu_custom_call.1} parent=1 // pred_check_branch
      %137 = sbr.rel (0) target = $region69
    $region68: #{tpu_custom_call.1} parent=1 // pred_region
      %139 = dma.done [#allocation9], 2048
    $region69: #{tpu_custom_call.1} parent=1 // pred_fallthru
      _
    // Predicated region
    $region70: #{tpu_custom_call.1} parent=1 // pred_check
      _
    $region71: #{tpu_custom_call.1} parent=1 // pred_check_branch
      %141 = sbr.rel (0) target = $region73
    $region72: #{tpu_custom_call.1} parent=1 // pred_region
      %143 = dma.done [#allocation9], 2048
    $region73: #{tpu_custom_call.1} parent=1 // pred_fallthru
      _
    // Predicated region
    $region74: #{tpu_custom_call.1} parent=1 // pred_check
      _
    $region75: #{tpu_custom_call.1} parent=1 // pred_check_branch
      %145 = sbr.rel (0) target = $region77
    $region76: #{tpu_custom_call.1} parent=1 // pred_region
      %147 = dma.done [#allocation12], 2048
    $region77: #{tpu_custom_call.1} parent=1 // pred_fallthru
      _
    // Predicated region
    $region78: #{tpu_custom_call.1} parent=1 // pred_check
      _
    $region79: #{tpu_custom_call.1} parent=1 // pred_check_branch
      %149 = sbr.rel (0) target = $region81
    $region80: #{tpu_custom_call.1} parent=1 // pred_region
      %151 = dma.done [#allocation12], 2048
    $region81: #{tpu_custom_call.1} parent=1 // pred_fallthru
      _
    %v152 = vld [vmem:[#allocation2] sm:$0xff]
    %v153 = vld [vmem:[#allocation5] sm:$0xff]
    %v154 = vld [vmem:[#allocation5 + $0x8] sm:$0xff]
    %v155 = vld [vmem:[#allocation5 + $0x10] sm:$0xff]
    %v156 = vld [vmem:[#allocation5 + $0x18] sm:$0xff]
    %v157 = vld [vmem:[#allocation5 + $0x20] sm:$0xff]
    %v158 = vld [vmem:[#allocation5 + $0x28] sm:$0xff]
    %v159 = vld [vmem:[#allocation5 + $0x30] sm:$0xff]
    %v160 = vld [vmem:[#allocation5 + $0x38] sm:$0xff]
    %v161 = vld [vmem:[#allocation5 + $0x40] sm:$0xff]
    %v162 = vld [vmem:[#allocation5 + $0x48] sm:$0xff]
    %v163 = vld [vmem:[#allocation5 + $0x50] sm:$0xff]
    %v164 = vld [vmem:[#allocation5 + $0x58] sm:$0xff]
    %v165 = vld [vmem:[#allocation5 + $0x60] sm:$0xff]
    %v166 = vld [vmem:[#allocation5 + $0x68] sm:$0xff]
    %v167 = vld [vmem:[#allocation5 + $0x70] sm:$0xff]
    %v168 = vld [vmem:[#allocation5 + $0x78] sm:$0xff]
    %v169 = vld [vmem:[%s2] sm:$0x1]
    %v171 = vperm.slane %v169, 0
    %173 = vmatpush.msra.mxu0 %v168
    %174 = vmatpush.msra.mxu0 %v167
    %175 = vmatpush.msra.mxu0 %v166
    %176 = vmatpush.msra.mxu0 %v165
    %177 = vmatpush.msra.mxu0 %v164
    %178 = vmatpush.msra.mxu0 %v163
    %179 = vmatpush.msra.mxu0 %v162
    %180 = vmatpush.msra.mxu0 %v161
    %181 = vmatpush.msra.mxu0 %v160
    %182 = vmatpush.msra.mxu0 %v159
    %183 = vmatpush.msra.mxu0 %v158
    %184 = vmatpush.msra.mxu0 %v157
    %185 = vmatpush.msra.mxu0 %v156
    %186 = vmatpush.msra.mxu0 %v155
    %187 = vmatpush.msra.mxu0 %v154
    %188 = vmatpush.msra.mxu0 %v153
    %189 = vmatmul.f32.gmra.mxu0 %v152
    %v190 = vpop.f32.mrf.mxu0
    %v191 = vadd.f32 %v171, %v190
    %192 = vdwg.mxu0
    %v193 = vmax.f32 %v191, 0.0
    %v194 = vld [vmem:[#allocation7] sm:$0xff]
    %v195 = vld [vmem:[#allocation7 + $0x8] sm:$0xff]
    %v196 = vld [vmem:[#allocation7 + $0x10] sm:$0xff]
    %v197 = vld [vmem:[#allocation7 + $0x18] sm:$0xff]
    %v198 = vld [vmem:[#allocation7 + $0x20] sm:$0xff]
    %v199 = vld [vmem:[#allocation7 + $0x28] sm:$0xff]
    %v200 = vld [vmem:[#allocation7 + $0x30] sm:$0xff]
    %v201 = vld [vmem:[#allocation7 + $0x38] sm:$0xff]
    %v202 = vld [vmem:[#allocation7 + $0x40] sm:$0xff]
    %v203 = vld [vmem:[#allocation7 + $0x48] sm:$0xff]
    %v204 = vld [vmem:[#allocation7 + $0x50] sm:$0xff]
    %v205 = vld [vmem:[#allocation7 + $0x58] sm:$0xff]
    %v206 = vld [vmem:[#allocation7 + $0x60] sm:$0xff]
    %v207 = vld [vmem:[#allocation7 + $0x68] sm:$0xff]
    %v208 = vld [vmem:[#allocation7 + $0x70] sm:$0xff]
    %v209 = vld [vmem:[#allocation7 + $0x78] sm:$0xff]
    %v210 = vld [vmem:[%s4] sm:$0x1]
    %v212 = vperm.slane %v210, 0
    %214 = vmatpush.msra.mxu0 %v209
    %215 = vmatpush.msra.mxu0 %v208
    %216 = vmatpush.msra.mxu0 %v207
    %217 = vmatpush.msra.mxu0 %v206
    %218 = vmatpush.msra.mxu0 %v205
    %219 = vmatpush.msra.mxu0 %v204
    %220 = vmatpush.msra.mxu0 %v203
    %221 = vmatpush.msra.mxu0 %v202
    %222 = vmatpush.msra.mxu0 %v201
    %223 = vmatpush.msra.mxu0 %v200
    %224 = vmatpush.msra.mxu0 %v199
    %225 = vmatpush.msra.mxu0 %v198
    %226 = vmatpush.msra.mxu0 %v197
    %227 = vmatpush.msra.mxu0 %v196
    %228 = vmatpush.msra.mxu0 %v195
    %229 = vmatpush.msra.mxu0 %v194
    %230 = vmatmul.f32.gmra.mxu0 %v193
    %v231 = vpop.f32.mrf.mxu0
    %v232 = vadd.f32 %v212, %v231
    %233 = vdwg.mxu0
    %v234 = vmax.f32 %v232, 0.0
    %v235 = vld [vmem:[#allocation8] sm:$0xff]
    %v236 = vld [vmem:[#allocation8 + $0x8] sm:$0xff]
    %v237 = vld [vmem:[#allocation8 + $0x10] sm:$0xff]
    %v238 = vld [vmem:[#allocation8 + $0x18] sm:$0xff]
    %v239 = vld [vmem:[#allocation8 + $0x20] sm:$0xff]
    %v240 = vld [vmem:[#allocation8 + $0x28] sm:$0xff]
    %v241 = vld [vmem:[#allocation8 + $0x30] sm:$0xff]
    %v242 = vld [vmem:[#allocation8 + $0x38] sm:$0xff]
    %v243 = vld [vmem:[#allocation8 + $0x40] sm:$0xff]
    %v244 = vld [vmem:[#allocation8 + $0x48] sm:$0xff]
    %v245 = vld [vmem:[#allocation8 + $0x50] sm:$0xff]
    %v246 = vld [vmem:[#allocation8 + $0x58] sm:$0xff]
    %v247 = vld [vmem:[#allocation8 + $0x60] sm:$0xff]
    %v248 = vld [vmem:[#allocation8 + $0x68] sm:$0xff]
    %v249 = vld [vmem:[#allocation8 + $0x70] sm:$0xff]
    %v250 = vld [vmem:[#allocation8 + $0x78] sm:$0xff]
    %v251 = vld [vmem:[%s6] sm:$0x1]
    %v253 = vperm.slane %v251, 0
    %255 = vmatpush.msra.mxu0 %v250
    %256 = vmatpush.msra.mxu0 %v249
    %257 = vmatpush.msra.mxu0 %v248
    %258 = vmatpush.msra.mxu0 %v247
    %259 = vmatpush.msra.mxu0 %v246
    %260 = vmatpush.msra.mxu0 %v245
    %261 = vmatpush.msra.mxu0 %v244
    %262 = vmatpush.msra.mxu0 %v243
    %263 = vmatpush.msra.mxu0 %v242
    %264 = vmatpush.msra.mxu0 %v241
    %265 = vmatpush.msra.mxu0 %v240
    %266 = vmatpush.msra.mxu0 %v239
    %267 = vmatpush.msra.mxu0 %v238
    %268 = vmatpush.msra.mxu0 %v237
    %269 = vmatpush.msra.mxu0 %v236
    %270 = vmatpush.msra.mxu0 %v235
    %271 = vmatmul.f32.gmra.mxu0 %v234
    %v272 = vpop.f32.mrf.mxu0
    %v273 = vadd.f32 %v253, %v272
    %274 = vdwg.mxu0
    %v275 = vmax.f32 %v273, 0.0
    %v276 = vadd.f32 %v193, %v275
    %v277 = vld [vmem:[#allocation10] sm:$0xff]
    %v278 = vld [vmem:[#allocation10 + $0x8] sm:$0xff]
    %v279 = vld [vmem:[#allocation10 + $0x10] sm:$0xff]
    %v280 = vld [vmem:[#allocation10 + $0x18] sm:$0xff]
    %v281 = vld [vmem:[#allocation10 + $0x20] sm:$0xff]
    %v282 = vld [vmem:[#allocation10 + $0x28] sm:$0xff]
    %v283 = vld [vmem:[#allocation10 + $0x30] sm:$0xff]
    %v284 = vld [vmem:[#allocation10 + $0x38] sm:$0xff]
    %v285 = vld [vmem:[#allocation10 + $0x40] sm:$0xff]
    %v286 = vld [vmem:[#allocation10 + $0x48] sm:$0xff]
    %v287 = vld [vmem:[#allocation10 + $0x50] sm:$0xff]
    %v288 = vld [vmem:[#allocation10 + $0x58] sm:$0xff]
    %v289 = vld [vmem:[#allocation10 + $0x60] sm:$0xff]
    %v290 = vld [vmem:[#allocation10 + $0x68] sm:$0xff]
    %v291 = vld [vmem:[#allocation10 + $0x70] sm:$0xff]
    %v292 = vld [vmem:[#allocation10 + $0x78] sm:$0xff]
    %v293 = vld [vmem:[%s8] sm:$0x1]
    %v295 = vperm.slane %v293, 0
    %297 = vmatpush.msra.mxu0 %v292
    %298 = vmatpush.msra.mxu0 %v291
    %299 = vmatpush.msra.mxu0 %v290
    %300 = vmatpush.msra.mxu0 %v289
    %301 = vmatpush.msra.mxu0 %v288
    %302 = vmatpush.msra.mxu0 %v287
    %303 = vmatpush.msra.mxu0 %v286
    %304 = vmatpush.msra.mxu0 %v285
    %305 = vmatpush.msra.mxu0 %v284
    %306 = vmatpush.msra.mxu0 %v283
    %307 = vmatpush.msra.mxu0 %v282
    %308 = vmatpush.msra.mxu0 %v281
    %309 = vmatpush.msra.mxu0 %v280
    %310 = vmatpush.msra.mxu0 %v279
    %311 = vmatpush.msra.mxu0 %v278
    %312 = vmatpush.msra.mxu0 %v277
    %313 = vmatmul.f32.gmra.mxu0 %v276
    %v314 = vpop.f32.mrf.mxu0
    %v315 = vadd.f32 %v295, %v314
    %316 = vdwg.mxu0
    %v317 = vmax.f32 %v315, 0.0
    %v318 = vld [vmem:[#allocation11] sm:$0xff]
    %v319 = vld [vmem:[#allocation11 + $0x8] sm:$0xff]
    %v320 = vld [vmem:[#allocation11 + $0x10] sm:$0xff]
    %v321 = vld [vmem:[#allocation11 + $0x18] sm:$0xff]
    %v322 = vld [vmem:[#allocation11 + $0x20] sm:$0xff]
    %v323 = vld [vmem:[#allocation11 + $0x28] sm:$0xff]
    %v324 = vld [vmem:[#allocation11 + $0x30] sm:$0xff]
    %v325 = vld [vmem:[#allocation11 + $0x38] sm:$0xff]
    %v326 = vld [vmem:[#allocation11 + $0x40] sm:$0xff]
    %v327 = vld [vmem:[#allocation11 + $0x48] sm:$0xff]
    %v328 = vld [vmem:[#allocation11 + $0x50] sm:$0xff]
    %v329 = vld [vmem:[#allocation11 + $0x58] sm:$0xff]
    %v330 = vld [vmem:[#allocation11 + $0x60] sm:$0xff]
    %v331 = vld [vmem:[#allocation11 + $0x68] sm:$0xff]
    %v332 = vld [vmem:[#allocation11 + $0x70] sm:$0xff]
    %v333 = vld [vmem:[#allocation11 + $0x78] sm:$0xff]
    %v334 = vld [vmem:[%s10] sm:$0x1]
    %v336 = vperm.slane %v334, 0
    %338 = vmatpush.msra.mxu0 %v333
    %339 = vmatpush.msra.mxu0 %v332
    %340 = vmatpush.msra.mxu0 %v331
    %341 = vmatpush.msra.mxu0 %v330
    %342 = vmatpush.msra.mxu0 %v329
    %343 = vmatpush.msra.mxu0 %v328
    %344 = vmatpush.msra.mxu0 %v327
    %345 = vmatpush.msra.mxu0 %v326
    %346 = vmatpush.msra.mxu0 %v325
    %347 = vmatpush.msra.mxu0 %v324
    %348 = vmatpush.msra.mxu0 %v323
    %349 = vmatpush.msra.mxu0 %v322
    %350 = vmatpush.msra.mxu0 %v321
    %351 = vmatpush.msra.mxu0 %v320
    %352 = vmatpush.msra.mxu0 %v319
    %353 = vmatpush.msra.mxu0 %v318
    %354 = vmatmul.f32.gmra.mxu0 %v317
    %v355 = vpop.f32.mrf.mxu0
    %v356 = vadd.f32 %v336, %v355
    %357 = vdwg.mxu0
    %v358 = vmax.f32 %v356, 0.0
    %v359 = vadd.f32 %v276, %v358
    %v360 = vld [vmem:[#allocation13] sm:$0xff]
    %v361 = vld [vmem:[#allocation13 + $0x8] sm:$0xff]
    %v362 = vld [vmem:[#allocation13 + $0x10] sm:$0xff]
    %v363 = vld [vmem:[#allocation13 + $0x18] sm:$0xff]
    %v364 = vld [vmem:[#allocation13 + $0x20] sm:$0xff]
    %v365 = vld [vmem:[#allocation13 + $0x28] sm:$0xff]
    %v366 = vld [vmem:[#allocation13 + $0x30] sm:$0xff]
    %v367 = vld [vmem:[#allocation13 + $0x38] sm:$0xff]
    %v368 = vld [vmem:[#allocation13 + $0x40] sm:$0xff]
    %v369 = vld [vmem:[#allocation13 + $0x48] sm:$0xff]
    %v370 = vld [vmem:[#allocation13 + $0x50] sm:$0xff]
    %v371 = vld [vmem:[#allocation13 + $0x58] sm:$0xff]
    %v372 = vld [vmem:[#allocation13 + $0x60] sm:$0xff]
    %v373 = vld [vmem:[#allocation13 + $0x68] sm:$0xff]
    %v374 = vld [vmem:[#allocation13 + $0x70] sm:$0xff]
    %v375 = vld [vmem:[#allocation13 + $0x78] sm:$0xff]
    %v376 = vld [vmem:[%s12] sm:$0x1]
    %v378 = vperm.slane %v376, 0
    %380 = vmatpush.msra.mxu0 %v375
    %381 = vmatpush.msra.mxu0 %v374
    %382 = vmatpush.msra.mxu0 %v373
    %383 = vmatpush.msra.mxu0 %v372
    %384 = vmatpush.msra.mxu0 %v371
    %385 = vmatpush.msra.mxu0 %v370
    %386 = vmatpush.msra.mxu0 %v369
    %387 = vmatpush.msra.mxu0 %v368
    %388 = vmatpush.msra.mxu0 %v367
    %389 = vmatpush.msra.mxu0 %v366
    %390 = vmatpush.msra.mxu0 %v365
    %391 = vmatpush.msra.mxu0 %v364
    %392 = vmatpush.msra.mxu0 %v363
    %393 = vmatpush.msra.mxu0 %v362
    %394 = vmatpush.msra.mxu0 %v361
    %395 = vmatpush.msra.mxu0 %v360
    %396 = vmatmul.f32.gmra.mxu0 %v359
    %v397 = vpop.f32.mrf.mxu0
    %v398 = vadd.f32 %v378, %v397
    %399 = vdwg.mxu0
    %400 = vst [vmem:[#allocation14] sm:$0xff] %v398
    // Predicated region
    $region82: #{tpu_custom_call.1} parent=1 // pred_check
      _
    $region83: #{tpu_custom_call.1} parent=1 // pred_check_branch
      %402 = sbr.rel (0) target = $region85
    $region84: #{tpu_custom_call.1} parent=1 // pred_region
      %404 = vsyncadd [#allocation4], 0
      %s406 = sshll.u32 [#allocation14], 4
      %s407 = int_to_ptr.vmem [resolvable:$true] %s406
      %s408 = sshll.u32 %s13, 4
      %s409 = int_to_ptr.hbm [resolvable:$true] %s408
      %411 = dma.vmem_to_hbm [thread:$0]  %s407, 128, %s409, [#allocation4]
    $region85: #{tpu_custom_call.1} parent=1 // pred_fallthru
      _
    // Predicated region
    $region86: #{tpu_custom_call.1} parent=1 // pred_check
      _
    $region87: #{tpu_custom_call.1} parent=1 // pred_check_branch
      %413 = sbr.rel (0) target = $region89
    $region88: #{tpu_custom_call.1} parent=1 // pred_region
      %415 = dma.done [#allocation4], 128
    $region89: #{tpu_custom_call.1} parent=1 // pred_fallthru
      _
    %416 = vsyncpa [#allocation3], 1
    %417 = vsyncpa [#allocation6], 1
    %418 = vsyncpa [#allocation9], 1
    %419 = vsyncpa [#allocation12], 1
    %420 = vsyncpa [#allocation4], 1

</llo_original>
